<compile_context>
chip_gen: v6e
topology: v6e:2x2x1
jax: 0.10.0
libtpu: 0.0.40
codegen_flags: <defaults>
</compile_context>

<pallas_src>
import jax
import jax.numpy as jnp
from jax.experimental import pallas as pl
from jax.experimental.pallas import tpu as pltpu


def _mdi_kernel(em_ref, ed_ref, s_ref, b_ref, o_ref):
    # em_ref, ed_ref: (TN, k*fm) VMEM tiles (k original rows folded per lane row)
    # s_ref:          (k*fm, k)  VMEM, resident block-diagonal selector * weight
    # b_ref:          (1, 1)     SMEM scalar bias
    # o_ref:          (TN, k)    output tile (full rows of the (N//k, k) output)
    prod = em_ref[...].astype(jnp.float32) * ed_ref[...].astype(jnp.float32)
    # Segmented fm-reduction + weight application in one tiny MXU matmul.
    z = jnp.dot(prod, s_ref[...], preferred_element_type=jnp.float32)  # (TN, k)
    z = z + b_ref[0, 0]
    o_ref[...] = jax.nn.sigmoid(z).astype(o_ref.dtype)


def _vmem_budget_bytes():
    """Generation-aware pipeline-buffer budget (~VMEM/3) and VMEM capacity."""
    try:
        cap = int(pltpu.get_tpu_info().vmem_capacity_bytes)
    except Exception:
        cap = 64 * 1024 * 1024  # conservative fallback (v7x per-TensorCore)
    return cap // 3, cap


def _default_tile_rows(n_super, kfm, in_itemsize, budget):
    """Row tile (in folded super-rows) such that the double-buffered pipeline
    stays inside `budget`, each step moves multi-MiB of HBM traffic, and the
    grid still has >= 4 steps when the problem is large enough."""
    kfm_pad = ((kfm + 127) // 128) * 128           # lane padding of input rows
    nbuf = 2                                       # default double buffering
    per_row = nbuf * (2 * kfm_pad * in_itemsize)   # em + ed pipeline buffers
    per_row += nbuf * 128 * 4                      # lane-padded f32 output buffer
    tn = max(8, (budget // per_row) // 8 * 8)
    # Guarantee >= 4 grid steps (pipeline overlap + v7x two-TensorCore split)
    # whenever there are enough rows to make that worthwhile.
    min_steps = 4
    if n_super >= min_steps * 8:
        tn = min(tn, ((pl.cdiv(n_super, min_steps) + 7) // 8) * 8)
    if tn >= n_super:
        tn = n_super  # single full block; block dim == array dim is legal
    return tn


def mdi_forward(em1, em2, ed1, ed2, w, b, *, tile_rows=None):
    """em1, ed1: (N, 1, fm).  w: (fm, 1).  b: (1,) or (1, 1).  Returns (N,) f32."""
    del em2, ed2  # unused, as in the PyTorch forward
    n, one, fm = em1.shape
    assert one == 1, "middle dim must be 1 (matches .squeeze(dim=1))"

    # Lane folding: pack k consecutive rows into one lane row when fm < 128.
    k = max(1, 128 // fm)
    kfm = k * fm
    n_pad = ((n + k - 1) // k) * k
    n_super = n_pad // k

    em2d = em1.reshape(n, fm)
    ed2d = ed1.reshape(n, fm)
    if n_pad != n:
        # Only hit when N is not a multiple of k; costs one extra HBM copy.
        em2d = jnp.pad(em2d, ((0, n_pad - n), (0, 0)))
        ed2d = jnp.pad(ed2d, ((0, n_pad - n), (0, 0)))
    em_f = em2d.reshape(n_super, kfm)   # contiguous reshape -> layout plumbing
    ed_f = ed2d.reshape(n_super, kfm)

    # Block-diagonal selector carrying the Linear(fm, 1) weight:
    #   S[j*fm + t, j] = w[t];  z = (em * ed) @ S  == per-original-row <em*ed, w>.
    w_col = jnp.reshape(w.astype(jnp.float32), (fm, 1))
    sel = (jnp.eye(k, dtype=jnp.float32)[:, None, :] * w_col[None, :, :])
    sel = sel.reshape(kfm, k)
    b_sc = jnp.reshape(b, (1, 1)).astype(jnp.float32)

    budget, vmem_cap = _vmem_budget_bytes()
    tn = tile_rows if tile_rows is not None else _default_tile_rows(
        n_super, kfm, jnp.dtype(em1.dtype).itemsize, budget)
    grid = (pl.cdiv(n_super, tn),)
    vmem_limit = int(max(budget, min(vmem_cap - (8 << 20), budget + (16 << 20))))

    out = pl.pallas_call(
        _mdi_kernel,
        out_shape=jax.ShapeDtypeStruct((n_super, k), jnp.float32),
        grid_spec=pltpu.PrefetchScalarGridSpec(
            num_scalar_prefetch=0,
            grid=grid,
            in_specs=[
                # TODO(synk): sweep pipeline_mode=pl.Buffered(3) on these two
                # inputs if a trace shows exposed DMA at the top of each step.
                pl.BlockSpec((tn, kfm), lambda i: (i, 0)),
                pl.BlockSpec((tn, kfm), lambda i: (i, 0)),
                # Selector stays resident across all grid steps.
                pl.BlockSpec((kfm, k), lambda i: (0, 0)),
                # Scalar bias in SMEM.
                pl.BlockSpec(memory_space=pltpu.MemorySpace.SMEM),
            ],
            out_specs=pl.BlockSpec((tn, k), lambda i: (i, 0)),
        ),
        compiler_params=pltpu.CompilerParams(
            dimension_semantics=("parallel",),   # megacore / v7x 2-TC sharding
            vmem_limit_bytes=vmem_limit,
        ),
    )(em_f, ed_f, sel, b_sc)

    return out.reshape(-1)[:n]  # final squeeze(dim=1) -> (N,)


def _reference(em1, ed1, w, b):
    node = em1[:, 0, :].astype(jnp.float32) * ed1[:, 0, :].astype(jnp.float32)
    z = node @ jnp.reshape(w.astype(jnp.float32), (-1, 1))
    z = z + jnp.reshape(b, (1, 1)).astype(jnp.float32)
    return jax.nn.sigmoid(z)[:, 0]


if __name__ == "__main__":
    key = jax.random.PRNGKey(0)
    k1, k2, k3, k4, kw, kb, k5, k6 = jax.random.split(key, 8)

    # Small shapes implied by the forward: embeddings (N, 1, fm).
    N, fm = 8, 32
    em1 = jax.random.normal(k1, (N, 1, fm), dtype=jnp.float32)
    em2 = jax.random.normal(k2, (N, 1, fm), dtype=jnp.float32)  # unused
    ed1 = jax.random.normal(k3, (N, 1, fm), dtype=jnp.float32)
    ed2 = jax.random.normal(k4, (N, 1, fm), dtype=jnp.float32)  # unused

    # Deterministic Linear(fm, 1) parameters (synthetic init).
    w = jax.random.normal(kw, (fm, 1), dtype=jnp.float32) * (1.0 / jnp.sqrt(fm))
    b = jax.random.normal(kb, (1, 1), dtype=jnp.float32) * 0.01

    out = mdi_forward(em1, em2, ed1, ed2, w, b)
    jax.block_until_ready(out)
    ref = _reference(em1, ed1, w, b)
    assert out.shape == (N,)
    assert jnp.allclose(out, ref, atol=1e-5, rtol=1e-5), (out, ref)

    # Second check: N not a multiple of the fold factor, default tile sizing
    # (multi-step parallel grid with a partial last tile).
    N2 = 301
    em1b = jax.random.normal(k5, (N2, 1, fm), dtype=jnp.float32)
    ed1b = jax.random.normal(k6, (N2, 1, fm), dtype=jnp.float32)
    out2 = mdi_forward(em1b, em1b, ed1b, ed1b, w, b)
    jax.block_until_ready(out2)
    ref2 = _reference(em1b, ed1b, w, b)
    assert out2.shape == (N2,)
    assert jnp.allclose(out2, ref2, atol=1e-5, rtol=1e-5)

    print("KERNEL_OK")
</pallas_src>

<mosaic_0001>
module attributes {stable_mosaic.version = 11 : i64} {
  func.func @_mdi_kernel(%arg0: i32, %arg1: memref<2x128xf32, #tpu.memory_space<vmem>>, %arg2: memref<2x128xf32, #tpu.memory_space<vmem>>, %arg3: memref<128x4xf32, #tpu.memory_space<vmem>>, %arg4: memref<1x1xf32, #tpu.memory_space<smem>>, %arg5: memref<2x4xf32, #tpu.memory_space<vmem>>) attributes {dimension_semantics = [#tpu.dimension_semantics<parallel>], iteration_bounds = array<i64: 1>, scalar_prefetch = 0 : i64, scratch_operands = 0 : i64, tpu.core_type = #tpu.core_type<tc>, window_params = [{transform_indices = @transform_0, window_bounds = array<i64: 2, 128>}, {transform_indices = @transform_1, window_bounds = array<i64: 2, 128>}, {pipeline_mode = #tpu.pipeline_mode<synchronous>, transform_indices = @transform_2, window_bounds = array<i64: 128, 4>}, {transform_indices = @transform_3, window_bounds = array<i64: 1, 1>}, {transform_indices = @transform_4, window_bounds = array<i64: 2, 4>}]} {
    %c0 = arith.constant 0 : index
    %c0_0 = arith.constant 0 : index
    %0 = vector.load %arg1[%c0, %c0_0] : memref<2x128xf32, #tpu.memory_space<vmem>>, vector<2x128xf32>
    %c0_1 = arith.constant 0 : index
    %c0_2 = arith.constant 0 : index
    %1 = vector.load %arg2[%c0_1, %c0_2] : memref<2x128xf32, #tpu.memory_space<vmem>>, vector<2x128xf32>
    %2 = arith.mulf %0, %1 : vector<2x128xf32>
    %c0_3 = arith.constant 0 : index
    %c0_4 = arith.constant 0 : index
    %3 = vector.load %arg3[%c0_3, %c0_4] : memref<128x4xf32, #tpu.memory_space<vmem>>, vector<128x4xf32>
    %cst = arith.constant dense<0.000000e+00> : vector<2x4xf32>
    %4 = tpu.matmul %2, %3, %cst {dimension_numbers = #tpu.dot_dimension_numbers<[1], [0], [0], [1], [0, 0, 1, 1], [], []>} : vector<2x128xf32>, vector<128x4xf32>, vector<2x4xf32> -> vector<2x4xf32>
    %c0_5 = arith.constant 0 : index
    %c0_6 = arith.constant 0 : index
    %5 = memref.load %arg4[%c0_5, %c0_6] : memref<1x1xf32, #tpu.memory_space<smem>>
    %6 = vector.broadcast %5 : f32 to vector<2x4xf32>
    %7 = arith.addf %4, %6 : vector<2x4xf32>
    %8 = arith.negf %7 : vector<2x4xf32>
    %9 = math.exp %8 : vector<2x4xf32>
    %cst_7 = arith.constant 1.000000e+00 : f32
    %10 = vector.broadcast %cst_7 : f32 to vector<2x4xf32>
    %11 = arith.addf %10, %9 : vector<2x4xf32>
    %12 = arith.divf %10, %11 : vector<2x4xf32>
    %c0_8 = arith.constant 0 : index
    %c0_9 = arith.constant 0 : index
    %13 = vector.load %arg5[%c0_8, %c0_9] : memref<2x4xf32, #tpu.memory_space<vmem>>, vector<2x4xf32>
    tpu.vector_store %arg5[%c0_8, %c0_9], %12 {strides = array<i32>} : memref<2x4xf32, #tpu.memory_space<vmem>>, vector<2x4xf32>,
    return
  }
  func.func @transform_0(%arg0: i32) -> (i32, i32) {
    %c0_i32 = arith.constant 0 : i32
    %c0_i32_0 = arith.constant 0 : i32
    return %arg0, %c0_i32 : i32, i32
  }
  func.func @transform_1(%arg0: i32) -> (i32, i32) {
    %c0_i32 = arith.constant 0 : i32
    %c0_i32_0 = arith.constant 0 : i32
    return %arg0, %c0_i32 : i32, i32
  }
  func.func @transform_2(%arg0: i32) -> (i32, i32) {
    %c0_i32 = arith.constant 0 : i32
    %c0_i32_0 = arith.constant 0 : i32
    %c0_i32_1 = arith.constant 0 : i32
    return %c0_i32, %c0_i32_0 : i32, i32
  }
  func.func @transform_3(%arg0: i32) -> (i32, i32) {
    %c0_i32 = arith.constant 0 : i32
    %c0_i32_0 = arith.constant 0 : i32
    %c0_i32_1 = arith.constant 0 : i32
    return %c0_i32, %c0_i32_0 : i32, i32
  }
  func.func @transform_4(%arg0: i32) -> (i32, i32) {
    %c0_i32 = arith.constant 0 : i32
    %c0_i32_0 = arith.constant 0 : i32
    return %arg0, %c0_i32 : i32, i32
  }
}

</mosaic_0001>

<llo_original>
// kernel: tpu_custom_call.1
$region0: #{tpu_custom_call.1}
  #allocation0 [shape = 'u32[]', space=smem, size = 0x4, offset = 0x4, fixed_abs, tag = 'smem constant byte address 0x4 - core index']
  #allocation1 [shape = 'u32[144,128]{1,0:T(1,128)}', space=vmem, size = 0x12000, scoped, tag = 'internal scratch']
  #allocation2 [shape = 'f32[1,1]{1,0:T(1,128)S(6)}', space=smem, size = 0x200, scoped, tag = 'scoped memory for tpu_custom_call.1']
  %s0 = inlined_call_operand.vmem [shape: f32[2,128], index: 0, kind: input, shape index: {}]
  %s1 = inlined_call_operand.vmem [shape: f32[2,128], index: 1, kind: input, shape index: {}]
  %s2 = inlined_call_operand.vmem [shape: f32[128,4], index: 2, kind: input, shape index: {}]
  %s3 = inlined_call_operand.<no memory space> [shape: f32[1,1], index: 3, kind: input, shape index: {}]
  %s4 = inlined_call_operand.hbm [shape: f32[2,4], index: 4, kind: output, shape index: {}]
  %s5 = sld [smem:[#allocation0]]
  $region26: #{tpu_custom_call.1} parent=0
    _
  %s7 = ssub.s32 1, %s5
  %s8 = scalar_select 0, %s7, %s5
  %9 = sst [smem:[#allocation2]] %s3
  $region1: #{tpu_custom_call.1} parent=0
    #allocation3 [shape = 'u8[1024]{0}', space=vmem, size = 0x400, scoped, tag = 'output window, operand 0, single buffered']
    #allocation4 [shape = 's32[1]{0}', space=sflag, size = 0x4, scoped, tag = 'scoped memory for tpu_custom_call.1']
    %10 = vsyncpa [#allocation4], 0
    // Predicated region
    $region2: #{tpu_custom_call.1} parent=1 // pred_check
      _
    $region3: #{tpu_custom_call.1} parent=1 // pred_check_branch
      %12 = sbr.rel (0) target = $region5
    $region4: #{tpu_custom_call.1} parent=1 // pred_region
      _
    $region5: #{tpu_custom_call.1} parent=1 // pred_fallthru
      _
    // Predicated region
    $region6: #{tpu_custom_call.1} parent=1 // pred_check
      _
    $region7: #{tpu_custom_call.1} parent=1 // pred_check_branch
      %14 = sbr.rel (0) target = $region9
    $region8: #{tpu_custom_call.1} parent=1 // pred_region
      _
    $region9: #{tpu_custom_call.1} parent=1 // pred_fallthru
      _
    // Predicated region
    $region10: #{tpu_custom_call.1} parent=1 // pred_check
      _
    $region11: #{tpu_custom_call.1} parent=1 // pred_check_branch
      %16 = sbr.rel (0) target = $region13
    $region12: #{tpu_custom_call.1} parent=1 // pred_region
      _
    $region13: #{tpu_custom_call.1} parent=1 // pred_fallthru
      _
    // Predicated region
    $region14: #{tpu_custom_call.1} parent=1 // pred_check
      _
    $region15: #{tpu_custom_call.1} parent=1 // pred_check_branch
      %18 = sbr.rel (0) target = $region17
    $region16: #{tpu_custom_call.1} parent=1 // pred_region
      _
    $region17: #{tpu_custom_call.1} parent=1 // pred_fallthru
      _
    %v19 = vld [vmem:[%s0] sm:$0x3]
    %v20 = vld [vmem:[%s1] sm:$0x3]
    %v21 = vmul.f32 %v19, %v20
    %v22 = vld [vmem:[%s2] sm:$0xff]
    %v23 = vld [vmem:[%s2 + $0x8] sm:$0xff]
    %v24 = vld [vmem:[%s2 + $0x10] sm:$0xff]
    %v25 = vld [vmem:[%s2 + $0x18] sm:$0xff]
    %v26 = vld [vmem:[%s2 + $0x20] sm:$0xff]
    %v27 = vld [vmem:[%s2 + $0x28] sm:$0xff]
    %v28 = vld [vmem:[%s2 + $0x30] sm:$0xff]
    %v29 = vld [vmem:[%s2 + $0x38] sm:$0xff]
    %v30 = vld [vmem:[%s2 + $0x40] sm:$0xff]
    %v31 = vld [vmem:[%s2 + $0x48] sm:$0xff]
    %v32 = vld [vmem:[%s2 + $0x50] sm:$0xff]
    %v33 = vld [vmem:[%s2 + $0x58] sm:$0xff]
    %v34 = vld [vmem:[%s2 + $0x60] sm:$0xff]
    %v35 = vld [vmem:[%s2 + $0x68] sm:$0xff]
    %v36 = vld [vmem:[%s2 + $0x70] sm:$0xff]
    %v37 = vld [vmem:[%s2 + $0x78] sm:$0xff]
    %s38 = sld [smem:[#allocation2]]
    %v39 = vstv %s38
    %40 = vmatprep.subr.mxu0 0.0
    %41 = vmatpush1.msra.mxu0 %v37
    %42 = vmatprep.subr.mxu0 0.0
    %43 = vmatpush1.msra.mxu0 %v36
    %44 = vmatprep.subr.mxu0 0.0
    %45 = vmatpush1.msra.mxu0 %v35
    %46 = vmatprep.subr.mxu0 0.0
    %47 = vmatpush1.msra.mxu0 %v34
    %48 = vmatprep.subr.mxu0 0.0
    %49 = vmatpush1.msra.mxu0 %v33
    %50 = vmatprep.subr.mxu0 0.0
    %51 = vmatpush1.msra.mxu0 %v32
    %52 = vmatprep.subr.mxu0 0.0
    %53 = vmatpush1.msra.mxu0 %v31
    %54 = vmatprep.subr.mxu0 0.0
    %55 = vmatpush1.msra.mxu0 %v30
    %56 = vmatprep.subr.mxu0 0.0
    %57 = vmatpush1.msra.mxu0 %v29
    %58 = vmatprep.subr.mxu0 0.0
    %59 = vmatpush1.msra.mxu0 %v28
    %60 = vmatprep.subr.mxu0 0.0
    %61 = vmatpush1.msra.mxu0 %v27
    %62 = vmatprep.subr.mxu0 0.0
    %63 = vmatpush1.msra.mxu0 %v26
    %64 = vmatprep.subr.mxu0 0.0
    %65 = vmatpush1.msra.mxu0 %v25
    %66 = vmatprep.subr.mxu0 0.0
    %67 = vmatpush1.msra.mxu0 %v24
    %68 = vmatprep.subr.mxu0 0.0
    %69 = vmatpush1.msra.mxu0 %v23
    %70 = vmatprep.subr.mxu0 0.0
    %71 = vmatpush1.msra.mxu0 %v22
    %72 = vmatprep.subr.mxu0 0.0
    %73 = vmatpush2.msra.mxu0 0.0
    %74 = vmatprep.subr.mxu0 0.0
    %75 = vmatpush2.msra.mxu0 0.0
    %76 = vmatprep.subr.mxu0 0.0
    %77 = vmatpush2.msra.mxu0 0.0
    %78 = vmatprep.subr.mxu0 0.0
    %79 = vmatpush2.msra.mxu0 0.0
    %80 = vmatprep.subr.mxu0 0.0
    %81 = vmatpush2.msra.mxu0 0.0
    %82 = vmatprep.subr.mxu0 0.0
    %83 = vmatpush2.msra.mxu0 0.0
    %84 = vmatprep.subr.mxu0 0.0
    %85 = vmatpush2.msra.mxu0 0.0
    %86 = vmatprep.subr.mxu0 0.0
    %87 = vmatpush2.msra.mxu0 0.0
    %88 = vmatprep.subr.mxu0 0.0
    %89 = vmatpush2.msra.mxu0 0.0
    %90 = vmatprep.subr.mxu0 0.0
    %91 = vmatpush2.msra.mxu0 0.0
    %92 = vmatprep.subr.mxu0 0.0
    %93 = vmatpush2.msra.mxu0 0.0
    %94 = vmatprep.subr.mxu0 0.0
    %95 = vmatpush2.msra.mxu0 0.0
    %96 = vmatprep.subr.mxu0 0.0
    %97 = vmatpush2.msra.mxu0 0.0
    %98 = vmatprep.subr.mxu0 0.0
    %99 = vmatpush2.msra.mxu0 0.0
    %100 = vmatprep.subr.mxu0 0.0
    %101 = vmatpush2.msra.mxu0 0.0
    %102 = vmatprep.subr.mxu0 0.0
    %103 = vmatpush2.msra.mxu0 0.0
    %104 = vmatprep.mubr.f32.mxu0 0.0
    %105 = vmatmul.mubr.f32.gmra.mxu0 %v21
    %v106 = vpop.f32.mrf.mxu0
    %v107 = vadd.f32 %v39, %v106
    %v108 = vpop.f32.mrf.mxu0
    %109 = vdwg.mxu0
    %v110 = vxor.u32 %v107, 2147483648
    %v111 = vmul.f32 %v110, 1.442695
    %v112 = vpow.pop %v111
    %v113 = vadd.f32 %v112, 1.0
    %v114 = vrcp.pop %v113
    %v115 = vmul.f32 1.0, %v114
    %vm116 = vcmask 25600
    %117 = vst.msk [vmem:[#allocation3] sm:$0x3] %vm116, %v115
    // Predicated region
    $region18: #{tpu_custom_call.1} parent=1 // pred_check
      _
    $region19: #{tpu_custom_call.1} parent=1 // pred_check_branch
      %119 = sbr.rel (0) target = $region21
    $region20: #{tpu_custom_call.1} parent=1 // pred_region
      %s121 = ssub.s32 32, 32
      %122 = vsyncadd [#allocation4], %s121
      %s124 = sshll.u32 [#allocation3], 4
      %s125 = int_to_ptr.vmem [resolvable:$true] %s124
      %127 = dma.vmem_to_hbm [thread:$0]  %s125, 32, %s4, [#allocation4]
    $region21: #{tpu_custom_call.1} parent=1 // pred_fallthru
      _
    // Predicated region
    $region22: #{tpu_custom_call.1} parent=1 // pred_check
      _
    $region23: #{tpu_custom_call.1} parent=1 // pred_check_branch
      %129 = sbr.rel (0) target = $region25
    $region24: #{tpu_custom_call.1} parent=1 // pred_region
      %130 = dma.done [#allocation4], 32
    $region25: #{tpu_custom_call.1} parent=1 // pred_fallthru
      _
    %131 = vsyncpa [#allocation4], 1

</llo_original>
